<compile_context>
chip_gen: v6e
topology: v6e:2x2x1
jax: 0.10.0
libtpu: 0.0.40
codegen_flags: <defaults>
</compile_context>

<pallas_src>
import jax
import jax.numpy as jnp
from jax import lax
from jax.experimental import pallas as pl
from jax.experimental.pallas import tpu as pltpu


def _round_up(a, b):
    return (a + b - 1) // b * b


def _cdiv(a, b):
    return -(-a // b)


def _plan_tiles(R, S, itemsize, *, core_split, input_vmem_budget_bytes):
    """Row/lane tile plan so 2 inputs x 2 pipeline buffers fit the VMEM budget."""
    LANE = 128
    row_align = 8 * max(1, 4 // itemsize)       # f32: 8, bf16: 16, u8/i8: 32
    per_cell = 2 * 2 * itemsize                 # 2 inputs x 2 pipeline buffers

    # Rows: keep all of them unless even a single 128-lane column would blow
    # the budget (very large B); then tile rows on an aligned block.
    max_rows = input_vmem_budget_bytes // (per_cell * LANE)
    if R <= max_rows:
        rb = R
    else:
        rb = max(row_align, (max_rows // row_align) * row_align)
    nr = _cdiv(R, rb)

    # Spatial (lane) tile: as wide as the remaining budget allows, capped at S.
    max_ts = (input_vmem_budget_bytes // (per_cell * rb)) // LANE * LANE
    max_ts = max(LANE, max_ts)
    ts = min(max_ts, _round_up(S, LANE))
    n_valid = _cdiv(S, ts)
    n_blocks = _round_up(n_valid, core_split)
    ts = _round_up(_cdiv(S, n_blocks), LANE)    # rebalance to reduce tail waste
    n_valid = _cdiv(S, ts)

    return rb, nr, ts, n_blocks, n_valid


def _make_kernel(*, S, ts, njc, needs_mask):
    """Builds the abs-diff row-sum accumulation kernel (static tiling params)."""

    def kernel(x_ref, y_ref, o_ref, acc_ref):
        j = pl.program_id(2)

        @pl.when(j == 0)
        def _():
            acc_ref[...] = jnp.zeros_like(acc_ref)

        # Load in the native dtype, upcast afterwards; accumulate in f32.
        diff = jnp.abs(x_ref[...].astype(jnp.float32) -
                       y_ref[...].astype(jnp.float32))          # (rb, ts)

        if needs_mask:
            # Zero lanes past the true spatial extent (tail / duplicated tile).
            gb = pl.program_id(0) * njc + j                      # global col block
            col = gb * ts + lax.broadcasted_iota(jnp.int32, diff.shape, 1)
            diff = jnp.where(col < S, diff, 0.0)

        acc_ref[...] += jnp.sum(diff, axis=-1, keepdims=True)   # (rb, 1)

        @pl.when(j == njc - 1)
        def _():
            o_ref[0] = acc_ref[...]                              # per-core partial

    return kernel


def perceptual_loss(x, y, *, div_factor=255.0, core_split=1,
                    input_vmem_budget_bytes=16 * 1024 * 1024):
    """L1 loss between normalize_batch(x) and normalize_batch(y).

    x, y: (B, 3, H, W), same dtype (fed to the kernel in their native dtype).
    core_split: 1 on single-TensorCore chips (v5e/v6e); set to 2 on v7x to
      shard spatial blocks across both TensorCores (CORE_PARALLEL).
    input_vmem_budget_bytes: double-buffered input footprint target. 16 MiB is
      safe on every chip (incl. v7x's 64 MiB VMEM); may be raised on v5e/v6e.
    """
    B, C, H, W = x.shape
    assert C == 3, "normalize_batch defines mean/std for 3 channels only"
    assert y.shape == x.shape and y.dtype == x.dtype

    R = B * C                 # rows of the flattened slab (batch * channel)
    S = H * W                 # spatial (lane) extent
    itemsize = jnp.dtype(x.dtype).itemsize

    x2 = x.reshape(R, S)      # metadata-only reshape, keeps native dtype
    y2 = y.reshape(R, S)

    rb, nr, ts, n_blocks, n_valid = _plan_tiles(
        R, S, itemsize, core_split=core_split,
        input_vmem_budget_bytes=input_vmem_budget_bytes)
    njc = n_blocks // core_split
    needs_mask = (n_blocks * ts != S)

    if n_blocks == n_valid:
        def col_of(i, j):
            return i * njc + j
    else:
        # Fully-out-of-range blocks (core_split round-up) re-read the last
        # valid block; the in-kernel mask zeroes their contribution.
        def col_of(i, j):
            return jnp.minimum(i * njc + j, n_valid - 1)

    x_spec = pl.BlockSpec((rb, ts), lambda i, r, j: (r, col_of(i, j)))
    y_spec = pl.BlockSpec((rb, ts), lambda i, r, j: (r, col_of(i, j)))
    out_spec = pl.BlockSpec((1, rb, 1), lambda i, r, j: (i, r, 0))

    in_bytes = 2 * 2 * rb * ts * itemsize
    vmem_limit = int(min(100 * 2**20, max(16 * 2**20, in_bytes + (8 << 20))))

    lead_sem = pltpu.CORE_PARALLEL if core_split > 1 else "arbitrary"

    partials = pl.pallas_call(
        _make_kernel(S=S, ts=ts, njc=njc, needs_mask=needs_mask),
        out_shape=jax.ShapeDtypeStruct((core_split, R, 1), jnp.float32),
        grid_spec=pltpu.PrefetchScalarGridSpec(
            num_scalar_prefetch=0,
            grid=(core_split, nr, njc),          # reduction axis (j) last
            in_specs=[x_spec, y_spec],
            out_specs=out_spec,
            scratch_shapes=[pltpu.VMEM((rb, 1), jnp.float32)],
        ),
        compiler_params=pltpu.CompilerParams(
            dimension_semantics=(lead_sem, "arbitrary", "arbitrary"),
            vmem_limit_bytes=vmem_limit,
        ),
    )(x2, y2)

    # Epilogue (exact algebra): |norm(x) - norm(y)| = |x - y| / (div_factor*std_c)
    row_sums = jnp.sum(partials, axis=0)[:, 0]                          # (R,)
    std_c = jnp.array([0.229, 0.224, 0.225], dtype=jnp.float32)
    inv_scale = 1.0 / (jnp.float32(div_factor) * jnp.tile(std_c, B))    # (R,)
    return jnp.sum(row_sums * inv_scale) / jnp.float32(R * S)


def perceptual_loss_ref(x, y, div_factor=255.0):
    """Pure-JAX reference mirroring the PyTorch module."""
    mean = jnp.array([0.485, 0.456, 0.406], jnp.float32).reshape(1, 3, 1, 1)
    std = jnp.array([0.229, 0.224, 0.225], jnp.float32).reshape(1, 3, 1, 1)
    xf = x.astype(jnp.float32)
    yf = y.astype(jnp.float32)
    xn = (xf / div_factor - mean) / std
    yn = (yf / div_factor - mean) / std
    return jnp.mean(jnp.abs(xn - yn))


if __name__ == "__main__":
    key = jax.random.PRNGKey(0)
    kx, ky = jax.random.split(key)

    # Case 1: tile-aligned f32 (base path).
    B, C, H, W = 2, 3, 16, 16
    x = jax.random.uniform(kx, (B, C, H, W), jnp.float32, 0.0, 255.0)
    y = jax.random.uniform(ky, (B, C, H, W), jnp.float32, 0.0, 255.0)
    out = jax.block_until_ready(perceptual_loss(x, y))
    ref = jax.block_until_ready(perceptual_loss_ref(x, y))
    assert jnp.allclose(out, ref, rtol=1e-5, atol=1e-5), (out, ref)

    # Case 2: ragged spatial extent -> exercises the in-kernel tail mask
    # (no wrapper-side padding pass over HBM anymore).
    x2 = jax.random.uniform(kx, (1, 3, 13, 19), jnp.float32, 0.0, 255.0)
    y2 = jax.random.uniform(ky, (1, 3, 13, 19), jnp.float32, 0.0, 255.0)
    out2 = jax.block_until_ready(perceptual_loss(x2, y2))
    ref2 = jax.block_until_ready(perceptual_loss_ref(x2, y2))
    assert jnp.allclose(out2, ref2, rtol=1e-5, atol=1e-5), (out2, ref2)

    # Case 3: bf16 inputs stay bf16 all the way to the kernel (upcast in-body),
    # halving HBM traffic vs. a wrapper-side f32 cast.
    xb = x.astype(jnp.bfloat16)
    yb = y.astype(jnp.bfloat16)
    out3 = jax.block_until_ready(perceptual_loss(xb, yb))
    ref3 = jax.block_until_ready(perceptual_loss_ref(xb, yb))
    assert jnp.allclose(out3, ref3, rtol=1e-3, atol=1e-4), (out3, ref3)

    # TODO(synk): the module's unused self.mse_loss member has no role in
    # forward(); only the L1 path is implemented.
    print("KERNEL_OK")
</pallas_src>

<mosaic_0001>
module attributes {stable_mosaic.version = 11 : i64} {
  func.func @kernel(%arg0: i32, %arg1: i32, %arg2: i32, %arg3: memref<6x256xf32, #tpu.memory_space<vmem>>, %arg4: memref<6x256xf32, #tpu.memory_space<vmem>>, %arg5: memref<1x6x1xf32, #tpu.memory_space<vmem>>, %arg6: memref<6x1xf32, #tpu.memory_space<vmem>>) attributes {dimension_semantics = [#tpu.dimension_semantics<arbitrary>, #tpu.dimension_semantics<arbitrary>, #tpu.dimension_semantics<arbitrary>], iteration_bounds = array<i64: 1, 1, 1>, scalar_prefetch = 0 : i64, scratch_operands = 1 : i64, tpu.core_type = #tpu.core_type<tc>, window_params = [{transform_indices = @transform_0, window_bounds = array<i64: 6, 256>}, {transform_indices = @transform_1, window_bounds = array<i64: 6, 256>}, {transform_indices = @transform_2, window_bounds = array<i64: 1, 6, 1>}]} {
    %c0_i32 = arith.constant 0 : i32
    %0 = arith.cmpi eq, %arg2, %c0_i32 : i32
    %1 = arith.extui %0 : i1 to i32
    %c0_i32_0 = arith.constant 0 : i32
    %2 = arith.cmpi ne, %1, %c0_i32_0 : i32
    scf.if %2 {
      %cst_10 = arith.constant 0.000000e+00 : f32
      %15 = vector.broadcast %cst_10 : f32 to vector<6x1xf32>
      %c0_11 = arith.constant 0 : index
      %c0_12 = arith.constant 0 : index
      %16 = vector.load %arg6[%c0_11, %c0_12] : memref<6x1xf32, #tpu.memory_space<vmem>>, vector<6x1xf32>
      tpu.vector_store %arg6[%c0_11, %c0_12], %15 {strides = array<i32>} : memref<6x1xf32, #tpu.memory_space<vmem>>, vector<6x1xf32>,
    } else {
    }
    %c0 = arith.constant 0 : index
    %c0_1 = arith.constant 0 : index
    %3 = vector.load %arg3[%c0, %c0_1] : memref<6x256xf32, #tpu.memory_space<vmem>>, vector<6x256xf32>
    %c0_2 = arith.constant 0 : index
    %c0_3 = arith.constant 0 : index
    %4 = vector.load %arg4[%c0_2, %c0_3] : memref<6x256xf32, #tpu.memory_space<vmem>>, vector<6x256xf32>
    %5 = arith.subf %3, %4 : vector<6x256xf32>
    %6 = math.absf %5 : vector<6x256xf32>
    %c0_4 = arith.constant 0 : index
    %c0_5 = arith.constant 0 : index
    %7 = vector.load %arg6[%c0_4, %c0_5] : memref<6x1xf32, #tpu.memory_space<vmem>>, vector<6x1xf32>
    %cst = arith.constant dense<0.000000e+00> : vector<6xf32>
    %8 = vector.multi_reduction <add>, %6, %cst [1] : vector<6x256xf32> to vector<6xf32>
    %9 = vector.shape_cast %8 : vector<6xf32> to vector<6x1xf32>
    %10 = arith.addf %7, %9 : vector<6x1xf32>
    %c0_6 = arith.constant 0 : index
    %c0_7 = arith.constant 0 : index
    %11 = vector.load %arg6[%c0_6, %c0_7] : memref<6x1xf32, #tpu.memory_space<vmem>>, vector<6x1xf32>
    tpu.vector_store %arg6[%c0_6, %c0_7], %10 {strides = array<i32>} : memref<6x1xf32, #tpu.memory_space<vmem>>, vector<6x1xf32>,
    %c0_i32_8 = arith.constant 0 : i32
    %12 = arith.cmpi eq, %arg2, %c0_i32_8 : i32
    %13 = arith.extui %12 : i1 to i32
    %c0_i32_9 = arith.constant 0 : i32
    %14 = arith.cmpi ne, %13, %c0_i32_9 : i32
    scf.if %14 {
      %c0_10 = arith.constant 0 : index
      %c0_11 = arith.constant 0 : index
      %15 = vector.load %arg6[%c0_10, %c0_11] : memref<6x1xf32, #tpu.memory_space<vmem>>, vector<6x1xf32>
      %c0_12 = arith.constant 0 : index
      %c0_13 = arith.constant 0 : index
      %c0_14 = arith.constant 0 : index
      %16 = vector.load %arg5[%c0_12, %c0_13, %c0_14] : memref<1x6x1xf32, #tpu.memory_space<vmem>>, vector<1x6x1xf32>
      %17 = vector.shape_cast %16 : vector<1x6x1xf32> to vector<6x1xf32>
      %18 = vector.shape_cast %15 : vector<6x1xf32> to vector<1x6x1xf32>
      tpu.vector_store %arg5[%c0_12, %c0_13, %c0_14], %18 {strides = array<i32>} : memref<1x6x1xf32, #tpu.memory_space<vmem>>, vector<1x6x1xf32>,
    } else {
    }
    return
  }
  func.func @transform_0(%arg0: i32, %arg1: i32, %arg2: i32) -> (i32, i32) {
    %c1_i32 = arith.constant 1 : i32
    %0 = arith.muli %arg0, %c1_i32 : i32
    %1 = arith.addi %0, %arg2 : i32
    %c0_i32 = arith.constant 0 : i32
    return %arg1, %1 : i32, i32
  }
  func.func @transform_1(%arg0: i32, %arg1: i32, %arg2: i32) -> (i32, i32) {
    %c1_i32 = arith.constant 1 : i32
    %0 = arith.muli %arg0, %c1_i32 : i32
    %1 = arith.addi %0, %arg2 : i32
    %c0_i32 = arith.constant 0 : i32
    return %arg1, %1 : i32, i32
  }
  func.func @transform_2(%arg0: i32, %arg1: i32, %arg2: i32) -> (i32, i32, i32) {
    %c0_i32 = arith.constant 0 : i32
    %c0_i32_0 = arith.constant 0 : i32
    return %arg0, %arg1, %c0_i32 : i32, i32, i32
  }
}

</mosaic_0001>

<llo_original>
// kernel: tpu_custom_call.1
$region0: #{tpu_custom_call.1}
  #allocation0 [shape = 'u32[]', space=smem, size = 0x4, offset = 0x4, fixed_abs, tag = 'smem constant byte address 0x4 - core index']
  #allocation1 [shape = 'u32[144,128]{1,0:T(1,128)}', space=vmem, size = 0x12000, scoped, tag = 'internal scratch']
  #allocation2 [shape = 'f32[6,1]{1,0:T(8,128)}', space=vmem, size = 0x1000, scoped, tag = 'scratch operand']
  %s0 = inlined_call_operand.hbm [shape: f32[6,256], index: 0, kind: input, shape index: {}]
  %s1 = inlined_call_operand.hbm [shape: f32[6,256], index: 1, kind: input, shape index: {}]
  %s2 = inlined_call_operand.vmem [shape: f32[1,6,1], index: 2, kind: output, shape index: {}]
  %s3 = sld [smem:[#allocation0]]
  $region34: #{tpu_custom_call.1} parent=0
    _
  %s5 = ssub.s32 1, %s3
  %s6 = scalar_select 0, %s5, %s3
  $region1: #{tpu_custom_call.1} parent=0
    #allocation3 [shape = 'u8[8192]{0}', space=vmem, size = 0x2000, scoped, tag = 'input window, operand 0, single buffered']
    #allocation4 [shape = 's32[1]{0}', space=sflag, size = 0x4, scoped, tag = 'scoped memory for tpu_custom_call.1']
    #allocation5 [shape = 'u8[8192]{0}', space=vmem, size = 0x2000, scoped, tag = 'input window, operand 1, single buffered']
    #allocation6 [shape = 's32[1]{0}', space=sflag, size = 0x4, scoped, tag = 'scoped memory for tpu_custom_call.1']
    %7 = vsyncpa [#allocation4], 0
    %8 = vsyncpa [#allocation6], 0
    // Predicated region
    $region2: #{tpu_custom_call.1} parent=1 // pred_check
      _
    $region3: #{tpu_custom_call.1} parent=1 // pred_check_branch
      %10 = sbr.rel (0) target = $region5
    $region4: #{tpu_custom_call.1} parent=1 // pred_region
      %s11 = sadd.s32 0, 0
      %s12 = smul.u32 2, %s11
      %s14 = ssub.s32 256, 256
      %15 = vsyncadd [#allocation4], %s14
      %s16 = smul.addr %s12, 128
      %s17 = scalar_lea.hbm %s0, %s16
      %s19 = sshll.u32 [#allocation3], 4
      %s20 = int_to_ptr.vmem [resolvable:$true] %s19
      %22 = dma.hbm_to_vmem [thread:$0]  %s17, 256, %s20, [#allocation4]
    $region5: #{tpu_custom_call.1} parent=1 // pred_fallthru
      _
    // Predicated region
    $region6: #{tpu_custom_call.1} parent=1 // pred_check
      _
    $region7: #{tpu_custom_call.1} parent=1 // pred_check_branch
      %24 = sbr.rel (0) target = $region9
    $region8: #{tpu_custom_call.1} parent=1 // pred_region
      %s25 = sadd.s32 0, 0
      %s26 = smul.u32 2, %s25
      %s28 = ssub.s32 256, 256
      %29 = vsyncadd [#allocation6], %s28
      %s30 = smul.addr %s26, 128
      %s31 = scalar_lea.hbm %s1, %s30
      %s33 = sshll.u32 [#allocation5], 4
      %s34 = int_to_ptr.vmem [resolvable:$true] %s33
      %36 = dma.hbm_to_vmem [thread:$0]  %s31, 256, %s34, [#allocation6]
    $region9: #{tpu_custom_call.1} parent=1 // pred_fallthru
      _
    // Predicated region
    $region10: #{tpu_custom_call.1} parent=1 // pred_check
      _
    $region11: #{tpu_custom_call.1} parent=1 // pred_check_branch
      %38 = sbr.rel (0) target = $region13
    $region12: #{tpu_custom_call.1} parent=1 // pred_region
      %39 = dma.done [#allocation4], 256
    $region13: #{tpu_custom_call.1} parent=1 // pred_fallthru
      _
    // Predicated region
    $region14: #{tpu_custom_call.1} parent=1 // pred_check
      _
    $region15: #{tpu_custom_call.1} parent=1 // pred_check_branch
      %41 = sbr.rel (0) target = $region17
    $region16: #{tpu_custom_call.1} parent=1 // pred_region
      %42 = dma.done [#allocation6], 256
    $region17: #{tpu_custom_call.1} parent=1 // pred_fallthru
      _
    %s43 = sadd.s32 0, 0
    %s44 = smul.u32 2, %s43
    %s45 = sadd.s32 0, 0
    %s46 = smul.u32 2, %s45
    %p47 = scmp.eq.s32.totalorder 0, 0
    // Predicated region
    $region18: #{tpu_custom_call.1} parent=1 // pred_check
      %p48 = pneg %p47
    $region19: #{tpu_custom_call.1} parent=1 // pred_check_branch
      %50 = sbr.rel (%p48) target = $region21
    $region20: #{tpu_custom_call.1} parent=1 // pred_region
      %vm51 = vcmask 5120
      %52 = vst.msk [vmem:[#allocation2] sm:$0x3f] %vm51, 0.0
    $region21: #{tpu_custom_call.1} parent=1 // pred_fallthru
      _
    %v53 = vld [vmem:[#allocation3] sm:$0x3f]
    %v54 = vld [vmem:[#allocation3 + $0x8] sm:$0x3f]
    %v55 = vld [vmem:[#allocation5] sm:$0x3f]
    %v56 = vld [vmem:[#allocation5 + $0x8] sm:$0x3f]
    %v57 = vsub.f32 %v53, %v55
    %v58 = vsub.f32 %v54, %v56
    %v59 = vand.u32 2147483647, %v57
    %v60 = vand.u32 2147483647, %v58
    %v61 = vld [vmem:[#allocation2] sm:$0x3f]
    %vm62 = vcmask 1045504
    %v63 = vsel %vm62, %v59, 0.0
    %v64 = vsel %vm62, %v60, 0.0
    %v65 = vadd.f32 %v63, %v64
    %66 = vadd.xlane.f32.xlu0 %v65
    %v67 = vpop.xlane.xlu0 %66
    %v68 = vadd.f32 %v61, %v67
    %vm69 = vcmask 5120
    %70 = vst.msk [vmem:[#allocation2] sm:$0x3f] %vm69, %v68
    // Predicated region
    $region22: #{tpu_custom_call.1} parent=1 // pred_check
      %p71 = pneg %p47
    $region23: #{tpu_custom_call.1} parent=1 // pred_check_branch
      %73 = sbr.rel (%p71) target = $region25
    $region24: #{tpu_custom_call.1} parent=1 // pred_region
      %v74 = vld [vmem:[#allocation2] sm:$0x3f]
      %75 = vst.msk [vmem:[%s2] sm:$0x3f] %vm69, %v74
    $region25: #{tpu_custom_call.1} parent=1 // pred_fallthru
      _
    // Predicated region
    $region26: #{tpu_custom_call.1} parent=1 // pred_check
      _
    $region27: #{tpu_custom_call.1} parent=1 // pred_check_branch
      %77 = sbr.rel (0) target = $region29
    $region28: #{tpu_custom_call.1} parent=1 // pred_region
      _
    $region29: #{tpu_custom_call.1} parent=1 // pred_fallthru
      _
    // Predicated region
    $region30: #{tpu_custom_call.1} parent=1 // pred_check
      _
    $region31: #{tpu_custom_call.1} parent=1 // pred_check_branch
      %79 = sbr.rel (0) target = $region33
    $region32: #{tpu_custom_call.1} parent=1 // pred_region
      _
    $region33: #{tpu_custom_call.1} parent=1 // pred_fallthru
      _
    %80 = vsyncpa [#allocation4], 1
    %81 = vsyncpa [#allocation6], 1

</llo_original>
